<compile_context>
chip_gen: v7x
topology: tpu7x:2x2x1
jax: 0.10.0
libtpu: 0.0.40
codegen_flags: <defaults>
</compile_context>

<pallas_src>
import functools

import jax
import jax.numpy as jnp
from jax.experimental import pallas as pl
from jax.experimental.pallas import tpu as pltpu

LANE = 128


def _round_up(x, m):
    return (x + m - 1) // m * m


def _mxu(a, b):
    """bf16 MXU matmul with f32 accumulation."""
    return jnp.dot(a.astype(jnp.bfloat16), b.astype(jnp.bfloat16),
                   preferred_element_type=jnp.float32)


def _gcn_layer(a, h, w, b):
    """One GCNConv:  z = A_hat @ H @ W + b, matmul order chosen by width."""
    f_in, f_out = w.shape  # static (padded) widths
    if f_out >= f_in:
        # Aggregate at the narrower input width, then transform: (A @ H) @ W
        z = _mxu(_mxu(a, h), w)
    else:
        # Transform first so the N^2 matmul runs at the narrower output width.
        z = _mxu(a, _mxu(h, w))
    return z + b  # f32 bias broadcast


def fused_gcn_kernel(a_ref, x_ref, w1_ref, b1_ref, w2_ref, b2_ref,
                     w3_ref, b3_ref, o_ref, *, output_dim):
    """Fused 3-layer GCN forward: relu -> relu -> masked log_softmax."""
    a = a_ref[...]                                             # bf16 [N, N]

    h = jnp.maximum(_gcn_layer(a, x_ref[...], w1_ref[...], b1_ref[...]), 0.0)
    # F.dropout(training=False) -> identity
    h = jnp.maximum(_gcn_layer(a, h, w2_ref[...], b2_ref[...]), 0.0)
    # F.dropout(training=False) -> identity
    h = _gcn_layer(a, h, w3_ref[...], b3_ref[...])             # f32 [N, out_pad]

    # log_softmax over dim=1, restricted to the true output_dim columns
    # (padded columns must not contribute to the max / normalizer).
    col = jax.lax.broadcasted_iota(jnp.int32, h.shape, 1)
    valid = col < output_dim
    hm = jnp.where(valid, h, jnp.float32(-1e30))
    m = jnp.max(hm, axis=1, keepdims=True)
    s = hm - m
    lse = jnp.log(jnp.sum(jnp.where(valid, jnp.exp(s), 0.0),
                          axis=1, keepdims=True))
    o_ref[...] = (s - lse).astype(o_ref.dtype)


def _pad2d(arr, rows, cols):
    return jnp.pad(arr, ((0, rows - arr.shape[0]), (0, cols - arr.shape[1])))


@functools.partial(jax.jit, static_argnames=("output_dim",))
def gcn_forward(params, x, a_hat, output_dim):
    """3-layer GCN forward (eval mode), fused into one Pallas kernel."""
    n, f_in = x.shape
    hidden_dim = params["w1"].shape[1]
    hp = _round_up(hidden_dim, LANE)        # padded hidden width
    op = _round_up(output_dim, LANE)        # padded output width (lane-dense store)

    # bf16 MXU operands (halves HBM->VMEM DMA bytes); biases stay f32.
    a_bf = a_hat.astype(jnp.bfloat16)
    x_bf = x.astype(jnp.bfloat16)
    w1p = _pad2d(params["w1"], f_in, hp).astype(jnp.bfloat16)
    w2p = _pad2d(params["w2"], hp, hp).astype(jnp.bfloat16)
    w3p = _pad2d(params["w3"], hp, op).astype(jnp.bfloat16)
    b1p = _pad2d(params["b1"].reshape(1, -1), 1, hp).astype(jnp.float32)
    b2p = _pad2d(params["b2"].reshape(1, -1), 1, hp).astype(jnp.float32)
    b3p = _pad2d(params["b3"].reshape(1, -1), 1, op).astype(jnp.float32)

    # Advisory cost hint for XLA scheduling of the custom call.
    flops = (2 * n * n * f_in + 2 * n * f_in * hp      # layer 1 (aggregate first)
             + 2 * n * n * hp + 2 * n * hp * hp        # layer 2
             + 2 * n * n * hp + 2 * n * hp * op)       # layer 3
    transcendentals = n * op + n                       # exp + log per row
    bytes_accessed = (a_bf.size * 2 + x_bf.size * 2
                      + (w1p.size + w2p.size + w3p.size) * 2
                      + (b1p.size + b2p.size + b3p.size) * 4
                      + n * op * 4)

    kernel = functools.partial(fused_gcn_kernel, output_dim=output_dim)
    vmem = pl.BlockSpec(memory_space=pltpu.MemorySpace.VMEM)  # whole-array blocks

    out_padded = pl.pallas_call(
        kernel,
        out_shape=jax.ShapeDtypeStruct((n, op), jnp.float32),
        in_specs=[vmem] * 8,        # a, x, w1, b1, w2, b2, w3, b3
        out_specs=vmem,
        cost_estimate=pl.CostEstimate(flops=flops,
                                      transcendentals=transcendentals,
                                      bytes_accessed=bytes_accessed),
    )(a_bf, x_bf, w1p, b1p, w2p, b2p, w3p, b3p)

    return out_padded[:, :output_dim]


def gcn_reference(params, x, a_hat):
    """Pure-JAX f32 reference of the same forward pass."""
    h = jnp.maximum(a_hat @ (x @ params["w1"]) + params["b1"], 0.0)
    h = jnp.maximum(a_hat @ (h @ params["w2"]) + params["b2"], 0.0)
    h = a_hat @ (h @ params["w3"]) + params["b3"]
    return jax.nn.log_softmax(h, axis=1)


def build_normalized_adjacency(edge_index, num_nodes):
    """Dense D^-1/2 (A + I) D^-1/2 from an edge_index [2, E] (made symmetric)."""
    src, dst = edge_index[0], edge_index[1]
    a = jnp.zeros((num_nodes, num_nodes), dtype=jnp.float32)
    a = a.at[dst, src].set(1.0)
    a = a.at[src, dst].set(1.0)                       # undirected
    a = a + jnp.eye(num_nodes, dtype=jnp.float32)     # self-loops
    a = jnp.minimum(a, 1.0)                           # dedupe multi-edges
    deg = jnp.sum(a, axis=1)
    d_inv_sqrt = 1.0 / jnp.sqrt(deg)
    return a * d_inv_sqrt[:, None] * d_inv_sqrt[None, :]


def init_params(key, input_dim, hidden_dim, output_dim):
    """Deterministic glorot-style init (GCNConv: glorot weights, zero bias)."""
    k1, k2, k3 = jax.random.split(key, 3)

    def glorot(k, fan_in, fan_out):
        limit = jnp.sqrt(6.0 / (fan_in + fan_out))
        return jax.random.uniform(
            k, (fan_in, fan_out), jnp.float32, minval=-limit, maxval=limit
        )

    return {
        "w1": glorot(k1, input_dim, hidden_dim),
        "b1": jnp.zeros((hidden_dim,), jnp.float32),
        "w2": glorot(k2, hidden_dim, hidden_dim),
        "b2": jnp.zeros((hidden_dim,), jnp.float32),
        "w3": glorot(k3, hidden_dim, output_dim),
        "b3": jnp.zeros((output_dim,), jnp.float32),
    }


if __name__ == "__main__":
    num_nodes = 64
    input_dim, hidden_dim, output_dim = 16, 32, 8
    num_edges = 256

    key = jax.random.PRNGKey(0)
    k_x, k_e, k_p = jax.random.split(key, 3)

    # Node features [N, F_in] and random edge_index [2, E].
    x = jax.random.normal(k_x, (num_nodes, input_dim), dtype=jnp.float32)
    edge_index = jax.random.randint(k_e, (2, num_edges), 0, num_nodes, dtype=jnp.int32)

    a_hat = build_normalized_adjacency(edge_index, num_nodes)
    params = init_params(k_p, input_dim, hidden_dim, output_dim)

    out = gcn_forward(params, x, a_hat, output_dim)
    out = jax.block_until_ready(out)

    assert out.shape == (num_nodes, output_dim)
    # Rows of log_softmax output should exponentiate-and-sum to 1.
    row_sums = jnp.sum(jnp.exp(out), axis=1)
    assert bool(jnp.all(jnp.abs(row_sums - 1.0) < 1e-3))
    # Loose check against the f32 reference (bf16 MXU inputs, f32 accumulate).
    ref = gcn_reference(params, x, a_hat)
    assert bool(jnp.all(jnp.abs(out - ref) < 1e-1))

    print("KERNEL_OK")
</pallas_src>

<mosaic_0001>
module attributes {stable_mosaic.version = 11 : i64} {
  func.func @fused_gcn_kernel(%arg0: memref<64x64xbf16, #tpu.memory_space<vmem>>, %arg1: memref<64x16xbf16, #tpu.memory_space<vmem>>, %arg2: memref<16x128xbf16, #tpu.memory_space<vmem>>, %arg3: memref<1x128xf32, #tpu.memory_space<vmem>>, %arg4: memref<128x128xbf16, #tpu.memory_space<vmem>>, %arg5: memref<1x128xf32, #tpu.memory_space<vmem>>, %arg6: memref<128x128xbf16, #tpu.memory_space<vmem>>, %arg7: memref<1x128xf32, #tpu.memory_space<vmem>>, %arg8: memref<64x128xf32, #tpu.memory_space<vmem>>) attributes {dimension_semantics = [], scalar_prefetch = 0 : i64, scratch_operands = 0 : i64, tpu.core_type = #tpu.core_type<tc>} {
    %c0 = arith.constant 0 : index
    %c0_0 = arith.constant 0 : index
    %0 = vector.load %arg0[%c0, %c0_0] : memref<64x64xbf16, #tpu.memory_space<vmem>>, vector<64x64xbf16>
    %c0_1 = arith.constant 0 : index
    %c0_2 = arith.constant 0 : index
    %1 = vector.load %arg1[%c0_1, %c0_2] : memref<64x16xbf16, #tpu.memory_space<vmem>>, vector<64x16xbf16>
    %c0_3 = arith.constant 0 : index
    %c0_4 = arith.constant 0 : index
    %2 = vector.load %arg2[%c0_3, %c0_4] : memref<16x128xbf16, #tpu.memory_space<vmem>>, vector<16x128xbf16>
    %c0_5 = arith.constant 0 : index
    %c0_6 = arith.constant 0 : index
    %3 = vector.load %arg3[%c0_5, %c0_6] : memref<1x128xf32, #tpu.memory_space<vmem>>, vector<1x128xf32>
    %cst = arith.constant dense<0.000000e+00> : vector<64x16xf32>
    %4 = tpu.matmul %0, %1, %cst {dimension_numbers = #tpu.dot_dimension_numbers<[1], [0], [0], [1], [0, 0, 1, 1], [], []>} : vector<64x64xbf16>, vector<64x16xbf16>, vector<64x16xf32> -> vector<64x16xf32>
    %5 = arith.truncf %4 : vector<64x16xf32> to vector<64x16xbf16>
    %cst_7 = arith.constant dense<0.000000e+00> : vector<64x128xf32>
    %6 = tpu.matmul %5, %2, %cst_7 {dimension_numbers = #tpu.dot_dimension_numbers<[1], [0], [0], [1], [0, 0, 1, 1], [], []>} : vector<64x16xbf16>, vector<16x128xbf16>, vector<64x128xf32> -> vector<64x128xf32>
    %7 = vector.broadcast %3 : vector<1x128xf32> to vector<64x128xf32>
    %8 = arith.addf %6, %7 : vector<64x128xf32>
    %cst_8 = arith.constant 0.000000e+00 : f32
    %9 = vector.broadcast %cst_8 : f32 to vector<64x128xf32>
    %10 = arith.maximumf %8, %9 : vector<64x128xf32>
    %c0_9 = arith.constant 0 : index
    %c0_10 = arith.constant 0 : index
    %11 = vector.load %arg4[%c0_9, %c0_10] : memref<128x128xbf16, #tpu.memory_space<vmem>>, vector<128x128xbf16>
    %c0_11 = arith.constant 0 : index
    %c0_12 = arith.constant 0 : index
    %12 = vector.load %arg5[%c0_11, %c0_12] : memref<1x128xf32, #tpu.memory_space<vmem>>, vector<1x128xf32>
    %13 = arith.truncf %10 : vector<64x128xf32> to vector<64x128xbf16>
    %cst_13 = arith.constant dense<0.000000e+00> : vector<64x128xf32>
    %14 = tpu.matmul %0, %13, %cst_13 {dimension_numbers = #tpu.dot_dimension_numbers<[1], [0], [0], [1], [0, 0, 1, 1], [], []>} : vector<64x64xbf16>, vector<64x128xbf16>, vector<64x128xf32> -> vector<64x128xf32>
    %15 = arith.truncf %14 : vector<64x128xf32> to vector<64x128xbf16>
    %cst_14 = arith.constant dense<0.000000e+00> : vector<64x128xf32>
    %16 = tpu.matmul %15, %11, %cst_14 {dimension_numbers = #tpu.dot_dimension_numbers<[1], [0], [0], [1], [0, 0, 1, 1], [], []>} : vector<64x128xbf16>, vector<128x128xbf16>, vector<64x128xf32> -> vector<64x128xf32>
    %17 = vector.broadcast %12 : vector<1x128xf32> to vector<64x128xf32>
    %18 = arith.addf %16, %17 : vector<64x128xf32>
    %cst_15 = arith.constant 0.000000e+00 : f32
    %19 = vector.broadcast %cst_15 : f32 to vector<64x128xf32>
    %20 = arith.maximumf %18, %19 : vector<64x128xf32>
    %c0_16 = arith.constant 0 : index
    %c0_17 = arith.constant 0 : index
    %21 = vector.load %arg6[%c0_16, %c0_17] : memref<128x128xbf16, #tpu.memory_space<vmem>>, vector<128x128xbf16>
    %c0_18 = arith.constant 0 : index
    %c0_19 = arith.constant 0 : index
    %22 = vector.load %arg7[%c0_18, %c0_19] : memref<1x128xf32, #tpu.memory_space<vmem>>, vector<1x128xf32>
    %23 = arith.truncf %20 : vector<64x128xf32> to vector<64x128xbf16>
    %cst_20 = arith.constant dense<0.000000e+00> : vector<64x128xf32>
    %24 = tpu.matmul %0, %23, %cst_20 {dimension_numbers = #tpu.dot_dimension_numbers<[1], [0], [0], [1], [0, 0, 1, 1], [], []>} : vector<64x64xbf16>, vector<64x128xbf16>, vector<64x128xf32> -> vector<64x128xf32>
    %25 = arith.truncf %24 : vector<64x128xf32> to vector<64x128xbf16>
    %cst_21 = arith.constant dense<0.000000e+00> : vector<64x128xf32>
    %26 = tpu.matmul %25, %21, %cst_21 {dimension_numbers = #tpu.dot_dimension_numbers<[1], [0], [0], [1], [0, 0, 1, 1], [], []>} : vector<64x128xbf16>, vector<128x128xbf16>, vector<64x128xf32> -> vector<64x128xf32>
    %27 = vector.broadcast %22 : vector<1x128xf32> to vector<64x128xf32>
    %28 = arith.addf %26, %27 : vector<64x128xf32>
    %29 = tpu.iota {dimensions = array<i32: 1>} : vector<64x128xi32>
    %c8_i32 = arith.constant 8 : i32
    %30 = vector.broadcast %c8_i32 : i32 to vector<64x128xi32>
    %31 = arith.cmpi slt, %29, %30 : vector<64x128xi32>
    %cst_22 = arith.constant -1.000000e+30 : f32
    %32 = vector.broadcast %cst_22 : f32 to vector<64x128xf32>
    %33 = arith.select %31, %28, %32 : vector<64x128xi1>, vector<64x128xf32>
    %cst_23 = arith.constant dense<0xFF800000> : vector<64xf32>
    %34 = vector.multi_reduction <maximumf>, %33, %cst_23 [1] : vector<64x128xf32> to vector<64xf32>
    %35 = vector.shape_cast %34 : vector<64xf32> to vector<64x1xf32>
    %36 = vector.broadcast %35 : vector<64x1xf32> to vector<64x128xf32>
    %37 = arith.subf %33, %36 : vector<64x128xf32>
    %38 = math.exp %37 : vector<64x128xf32>
    %cst_24 = arith.constant 0.000000e+00 : f32
    %39 = vector.broadcast %cst_24 : f32 to vector<64x128xf32>
    %40 = arith.select %31, %38, %39 : vector<64x128xi1>, vector<64x128xf32>
    %cst_25 = arith.constant dense<0.000000e+00> : vector<64xf32>
    %41 = vector.multi_reduction <add>, %40, %cst_25 [1] : vector<64x128xf32> to vector<64xf32>
    %42 = vector.shape_cast %41 : vector<64xf32> to vector<64x1xf32>
    %43 = math.log %42 : vector<64x1xf32>
    %44 = vector.broadcast %43 : vector<64x1xf32> to vector<64x128xf32>
    %45 = arith.subf %37, %44 : vector<64x128xf32>
    %c0_26 = arith.constant 0 : index
    %c0_27 = arith.constant 0 : index
    %46 = vector.load %arg8[%c0_26, %c0_27] : memref<64x128xf32, #tpu.memory_space<vmem>>, vector<64x128xf32>
    tpu.vector_store %arg8[%c0_26, %c0_27], %45 {strides = array<i32>} : memref<64x128xf32, #tpu.memory_space<vmem>>, vector<64x128xf32>,
    return
  }
}

</mosaic_0001>

<llo_original>
// kernel: gcn_forward.1
$region0: #{gcn_forward.1}
  #allocation0 [shape = 'u32[]', space=smem, size = 0x4, offset = 0x4, fixed_abs, tag = 'smem constant byte address 0x4 - core index']
  #allocation1 [shape = 'u32[144,128]{1,0:T(1,128)}', space=vmem, size = 0x12000, scoped, tag = 'internal scratch']
  %s0 = inlined_call_operand.vmem [shape: bf16[64,64], index: 0, kind: input, shape index: {}]
  %s1 = inlined_call_operand.vmem [shape: bf16[64,16], index: 1, kind: input, shape index: {}]
  %s2 = inlined_call_operand.vmem [shape: bf16[16,128], index: 2, kind: input, shape index: {}]
  %s3 = inlined_call_operand.vmem [shape: f32[1,128], index: 3, kind: input, shape index: {}]
  %s4 = inlined_call_operand.vmem [shape: bf16[128,128], index: 4, kind: input, shape index: {}]
  %s5 = inlined_call_operand.vmem [shape: f32[1,128], index: 5, kind: input, shape index: {}]
  %s6 = inlined_call_operand.vmem [shape: bf16[128,128], index: 6, kind: input, shape index: {}]
  %s7 = inlined_call_operand.vmem [shape: f32[1,128], index: 7, kind: input, shape index: {}]
  %s8 = inlined_call_operand.vmem [shape: f32[64,128], index: 8, kind: output, shape index: {}]
  %s9 = sld [smem:[#allocation0]]
  $region42: #{gcn_forward.1} parent=0
    _
  %s11 = ssub.s32 1, %s9
  %s12 = scalar_select 0, %s11, %s9
  // Predicated region
  $region2: #{gcn_forward.1} parent=0 // pred_check
    _
  $region3: #{gcn_forward.1} parent=0 // pred_check_branch
    %14 = sbr.rel (0) target = $region5
  $region4: #{gcn_forward.1} parent=0 // pred_region
    _
  $region5: #{gcn_forward.1} parent=0 // pred_fallthru
    _
  // Predicated region
  $region6: #{gcn_forward.1} parent=0 // pred_check
    _
  $region7: #{gcn_forward.1} parent=0 // pred_check_branch
    %16 = sbr.rel (0) target = $region9
  $region8: #{gcn_forward.1} parent=0 // pred_region
    _
  $region9: #{gcn_forward.1} parent=0 // pred_fallthru
    _
  // Predicated region
  $region10: #{gcn_forward.1} parent=0 // pred_check
    _
  $region11: #{gcn_forward.1} parent=0 // pred_check_branch
    %18 = sbr.rel (0) target = $region13
  $region12: #{gcn_forward.1} parent=0 // pred_region
    _
  $region13: #{gcn_forward.1} parent=0 // pred_fallthru
    _
  // Predicated region
  $region14: #{gcn_forward.1} parent=0 // pred_check
    _
  $region15: #{gcn_forward.1} parent=0 // pred_check_branch
    %20 = sbr.rel (0) target = $region17
  $region16: #{gcn_forward.1} parent=0 // pred_region
    _
  $region17: #{gcn_forward.1} parent=0 // pred_fallthru
    _
  // Predicated region
  $region18: #{gcn_forward.1} parent=0 // pred_check
    _
  $region19: #{gcn_forward.1} parent=0 // pred_check_branch
    %22 = sbr.rel (0) target = $region21
  $region20: #{gcn_forward.1} parent=0 // pred_region
    _
  $region21: #{gcn_forward.1} parent=0 // pred_fallthru
    _
  // Predicated region
  $region22: #{gcn_forward.1} parent=0 // pred_check
    _
  $region23: #{gcn_forward.1} parent=0 // pred_check_branch
    %24 = sbr.rel (0) target = $region25
  $region24: #{gcn_forward.1} parent=0 // pred_region
    _
  $region25: #{gcn_forward.1} parent=0 // pred_fallthru
    _
  // Predicated region
  $region26: #{gcn_forward.1} parent=0 // pred_check
    _
  $region27: #{gcn_forward.1} parent=0 // pred_check_branch
    %26 = sbr.rel (0) target = $region29
  $region28: #{gcn_forward.1} parent=0 // pred_region
    _
  $region29: #{gcn_forward.1} parent=0 // pred_fallthru
    _
  // Predicated region
  $region30: #{gcn_forward.1} parent=0 // pred_check
    _
  $region31: #{gcn_forward.1} parent=0 // pred_check_branch
    %28 = sbr.rel (0) target = $region33
  $region32: #{gcn_forward.1} parent=0 // pred_region
    _
  $region33: #{gcn_forward.1} parent=0 // pred_fallthru
    _
  %v30 = vld [vmem:[%s0] sm:$0xf]
  %v31 = vld [vmem:[%s0 + $0x4] sm:$0xf]
  %v32 = vld [vmem:[%s0 + $0x8] sm:$0xf]
  %v33 = vld [vmem:[%s0 + $0xc] sm:$0xf]
  %v34 = vld [vmem:[%s0 + $0x10] sm:$0xf]
  %v35 = vld [vmem:[%s0 + $0x14] sm:$0xf]
  %v36 = vld [vmem:[%s0 + $0x18] sm:$0xf]
  %v37 = vld [vmem:[%s0 + $0x1c] sm:$0xf]
  %v38 = vld [vmem:[%s1] sm:$0xf]
  %v39 = vld [vmem:[%s1 + $0x4] sm:$0xf]
  %v40 = vld [vmem:[%s1 + $0x8] sm:$0xf]
  %v41 = vld [vmem:[%s1 + $0xc] sm:$0xf]
  %v42 = vld [vmem:[%s1 + $0x10] sm:$0xf]
  %v43 = vld [vmem:[%s1 + $0x14] sm:$0xf]
  %v44 = vld [vmem:[%s1 + $0x18] sm:$0xf]
  %v45 = vld [vmem:[%s1 + $0x1c] sm:$0xf]
  %v46 = vld [vmem:[%s2] sm:$0xf]
  %v47 = vld [vmem:[%s2 + $0x4] sm:$0xf]
  %v48 = vld [vmem:[%s3] sm:$0x1]
  %v57 = vunpack.c.l.b16 %v30
  %v58 = vunpack.c.l.b16 %v31
  %v59 = vunpack.c.l.b16 %v32
  %v60 = vunpack.c.l.b16 %v33
  %v61 = vunpack.c.l.b16 %v34
  %v62 = vunpack.c.l.b16 %v35
  %v63 = vunpack.c.l.b16 %v36
  %v64 = vunpack.c.l.b16 %v37
  %v65 = vpack.c.b16 %v58, %v57
  %v66 = vpack.c.b16 %v60, %v59
  %v67 = vpack.c.b16 %v62, %v61
  %v68 = vpack.c.b16 %v64, %v63
  %v77 = vunpack.c.l.b16 %v38
  %v78 = vunpack.c.l.b16 %v39
  %v79 = vunpack.c.l.b16 %v40
  %v80 = vunpack.c.l.b16 %v41
  %v81 = vunpack.c.l.b16 %v42
  %v82 = vunpack.c.l.b16 %v43
  %v83 = vunpack.c.l.b16 %v44
  %v84 = vunpack.c.l.b16 %v45
  %v85 = vpack.c.b16 %v78, %v77
  %v86 = vpack.c.b16 %v80, %v79
  %v87 = vpack.c.b16 %v82, %v81
  %v88 = vpack.c.b16 %v84, %v83
  %vm93 = vcmask 523264
  %v95 = vsel %vm93, %v65, 0
  %v98 = vsel %vm93, %v66, 0
  %v101 = vsel %vm93, %v67, 0
  %v104 = vsel %vm93, %v68, 0
  %106 = vmatprep.subr.bf16.mxu0 0
  %107 = vmatpush1.bf16.msra.mxu0 %v85
  %108 = vmatprep.subr.bf16.mxu0 0
  %109 = vmatpush1.bf16.msra.mxu0 %v86
  %110 = vmatprep.subr.bf16.mxu0 0
  %111 = vmatpush1.bf16.msra.mxu0 %v87
  %112 = vmatprep.subr.bf16.mxu0 0
  %113 = vmatpush1.bf16.msra.mxu0 %v88
  %114 = vmatprep.subr.bf16.mxu0 0
  %115 = vmatpush1.bf16.msra.mxu0 0
  %116 = vmatprep.subr.bf16.mxu0 0
  %117 = vmatpush1.bf16.msra.mxu0 0
  %118 = vmatprep.subr.bf16.mxu0 0
  %119 = vmatpush1.bf16.msra.mxu0 0
  %120 = vmatprep.subr.bf16.mxu0 0
  %121 = vmatpush1.bf16.msra.mxu0 0
  %122 = vmatprep.subr.bf16.mxu0 0
  %123 = vmatpush1.bf16.msra.mxu0 0
  %124 = vmatprep.subr.bf16.mxu0 0
  %125 = vmatpush1.bf16.msra.mxu0 0
  %126 = vmatprep.subr.bf16.mxu0 0
  %127 = vmatpush1.bf16.msra.mxu0 0
  %128 = vmatprep.subr.bf16.mxu0 0
  %129 = vmatpush1.bf16.msra.mxu0 0
  %130 = vmatprep.subr.bf16.mxu0 0
  %131 = vmatpush1.bf16.msra.mxu0 0
  %132 = vmatprep.subr.bf16.mxu0 0
  %133 = vmatpush1.bf16.msra.mxu0 0
  %134 = vmatprep.subr.bf16.mxu0 0
  %135 = vmatpush1.bf16.msra.mxu0 0
  %136 = vmatprep.subr.bf16.mxu0 0
  %137 = vmatpush1.bf16.msra.mxu0 0
  %138 = vmatprep.mubr.bf16.mxu0 0
  %139 = vmatmul.mubr.bf16.gmra.mrb[0].mxu0 %v95
  %v140 = vpop.f32.mrb[0].mxu0
  %v141 = vadd.f32 0.0, %v140
  %v142 = vpop.f32.mrb[0].mxu0
  %v143 = vpop.f32.mrb[0].mxu0
  %v144 = vadd.f32 0.0, %v143
  %v145 = vpop.f32.mrb[0].mxu0
  %146 = vmatprep.mubr.bf16.mxu0 0
  %147 = vmatmul.mubr.bf16.gmra.mrb[0].mxu0 %v98
  %v148 = vpop.f32.mrb[0].mxu0
  %v149 = vadd.f32 0.0, %v148
  %v150 = vpop.f32.mrb[0].mxu0
  %v151 = vpop.f32.mrb[0].mxu0
  %v152 = vadd.f32 0.0, %v151
  %v153 = vpop.f32.mrb[0].mxu0
  %154 = vmatprep.mubr.bf16.mxu0 0
  %155 = vmatmul.mubr.bf16.gmra.mrb[0].mxu0 %v101
  %v156 = vpop.f32.mrb[0].mxu0
  %v157 = vadd.f32 0.0, %v156
  %v158 = vpop.f32.mrb[0].mxu0
  %v159 = vpop.f32.mrb[0].mxu0
  %v160 = vadd.f32 0.0, %v159
  %v161 = vpop.f32.mrb[0].mxu0
  %162 = vmatprep.mubr.bf16.mxu0 0
  %163 = vmatmul.mubr.bf16.gmra.mrb[0].mxu0 %v104
  %v164 = vpop.f32.mrb[0].mxu0
  %v165 = vadd.f32 0.0, %v164
  %v166 = vpop.f32.mrb[0].mxu0
  %v167 = vpop.f32.mrb[0].mxu0
  %v168 = vadd.f32 0.0, %v167
  %v169 = vpop.f32.mrb[0].mxu0
  %170 = vdwg.mxu0
  %v171 = vpack.c.bf16 %v144, %v141
  %v172 = vpack.c.bf16 %v152, %v149
  %v173 = vpack.c.bf16 %v160, %v157
  %v174 = vpack.c.bf16 %v168, %v165
  %v176 = vlaneseq
  %v177 = vshrl.u32 %v176, 7
  %v178 = vsub.s32 0, %v177
  %v179 = vrot.slane %v48, %v178
  %v183 = vunpack.c.l.b16 %v46
  %v184 = vunpack.c.l.b16 %v47
  %v185 = vpack.c.b16 %v184, %v183
  %vm187 = vcmask 130048
  %v189 = vsel %vm187, %v171, 0
  %v192 = vsel %vm187, %v172, 0
  %v195 = vsel %vm187, %v173, 0
  %v198 = vsel %vm187, %v174, 0
  %200 = vmatprep.subr.bf16.mxu0 0
  %201 = vmatpush1.bf16.msra.mxu0 %v185
  %202 = vmatprep.subr.bf16.mxu0 0
  %203 = vmatpush1.bf16.msra.mxu0 0
  %204 = vmatprep.subr.bf16.mxu0 0
  %205 = vmatpush1.bf16.msra.mxu0 0
  %206 = vmatprep.subr.bf16.mxu0 0
  %207 = vmatpush1.bf16.msra.mxu0 0
  %208 = vmatprep.subr.bf16.mxu0 0
  %209 = vmatpush1.bf16.msra.mxu0 0
  %210 = vmatprep.subr.bf16.mxu0 0
  %211 = vmatpush1.bf16.msra.mxu0 0
  %212 = vmatprep.subr.bf16.mxu0 0
  %213 = vmatpush1.bf16.msra.mxu0 0
  %214 = vmatprep.subr.bf16.mxu0 0
  %215 = vmatpush1.bf16.msra.mxu0 0
  %216 = vmatprep.subr.bf16.mxu0 0
  %217 = vmatpush1.bf16.msra.mxu0 0
  %218 = vmatprep.subr.bf16.mxu0 0
  %219 = vmatpush1.bf16.msra.mxu0 0
  %220 = vmatprep.subr.bf16.mxu0 0
  %221 = vmatpush1.bf16.msra.mxu0 0
  %222 = vmatprep.subr.bf16.mxu0 0
  %223 = vmatpush1.bf16.msra.mxu0 0
  %224 = vmatprep.subr.bf16.mxu0 0
  %225 = vmatpush1.bf16.msra.mxu0 0
  %226 = vmatprep.subr.bf16.mxu0 0
  %227 = vmatpush1.bf16.msra.mxu0 0
  %228 = vmatprep.subr.bf16.mxu0 0
  %229 = vmatpush1.bf16.msra.mxu0 0
  %230 = vmatprep.subr.bf16.mxu0 0
  %231 = vmatpush1.bf16.msra.mxu0 0
  %232 = vmatprep.mubr.bf16.mxu0 0
  %233 = vmatmul.mubr.bf16.gmra.mrb[0].mxu0 %v189
  %v234 = vpop.f32.mrb[0].mxu0
  %v235 = vadd.f32 %v179, %v234
  %v236 = vpop.f32.mrb[0].mxu0
  %v237 = vpop.f32.mrb[0].mxu0
  %v238 = vadd.f32 %v179, %v237
  %v239 = vpop.f32.mrb[0].mxu0
  %240 = vmatprep.mubr.bf16.mxu0 0
  %241 = vmatmul.mubr.bf16.gmra.mrb[0].mxu0 %v192
  %v242 = vpop.f32.mrb[0].mxu0
  %v243 = vadd.f32 %v179, %v242
  %v244 = vpop.f32.mrb[0].mxu0
  %v245 = vpop.f32.mrb[0].mxu0
  %v246 = vadd.f32 %v179, %v245
  %v247 = vpop.f32.mrb[0].mxu0
  %248 = vmatprep.mubr.bf16.mxu0 0
  %249 = vmatmul.mubr.bf16.gmra.mrb[0].mxu0 %v195
  %v250 = vpop.f32.mrb[0].mxu0
  %v251 = vadd.f32 %v179, %v250
  %v252 = vpop.f32.mrb[0].mxu0
  %v253 = vpop.f32.mrb[0].mxu0
  %v254 = vadd.f32 %v179, %v253
  %v255 = vpop.f32.mrb[0].mxu0
  %256 = vmatprep.mubr.bf16.mxu0 0
  %257 = vmatmul.mubr.bf16.gmra.mrb[0].mxu0 %v198
  %v258 = vpop.f32.mrb[0].mxu0
  %v259 = vadd.f32 %v179, %v258
  %v260 = vpop.f32.mrb[0].mxu0
  %v261 = vpop.f32.mrb[0].mxu0
  %v262 = vadd.f32 %v179, %v261
  %v263 = vpop.f32.mrb[0].mxu0
  %264 = vdwg.mxu0
  %v265 = vmax.f32 %v235, 0.0
  %v266 = vmax.f32 %v238, 0.0
  %v267 = vmax.f32 %v243, 0.0
  %v268 = vmax.f32 %v246, 0.0
  %v269 = vmax.f32 %v251, 0.0
  %v270 = vmax.f32 %v254, 0.0
  %v271 = vmax.f32 %v259, 0.0
  %v272 = vmax.f32 %v262, 0.0
  %v273 = vld [vmem:[%s4] sm:$0xf]
  %v274 = vld [vmem:[%s4 + $0x4] sm:$0xf]
  %v275 = vld [vmem:[%s4 + $0x8] sm:$0xf]
  %v276 = vld [vmem:[%s4 + $0xc] sm:$0xf]
  %v277 = vld [vmem:[%s4 + $0x10] sm:$0xf]
  %v278 = vld [vmem:[%s4 + $0x14] sm:$0xf]
  %v279 = vld [vmem:[%s4 + $0x18] sm:$0xf]
  %v280 = vld [vmem:[%s4 + $0x1c] sm:$0xf]
  %v281 = vld [vmem:[%s4 + $0x20] sm:$0xf]
  %v282 = vld [vmem:[%s4 + $0x24] sm:$0xf]
  %v283 = vld [vmem:[%s4 + $0x28] sm:$0xf]
  %v284 = vld [vmem:[%s4 + $0x2c] sm:$0xf]
  %v285 = vld [vmem:[%s4 + $0x30] sm:$0xf]
  %v286 = vld [vmem:[%s4 + $0x34] sm:$0xf]
  %v287 = vld [vmem:[%s4 + $0x38] sm:$0xf]
  %v288 = vld [vmem:[%s4 + $0x3c] sm:$0xf]
  %v289 = vld [vmem:[%s5] sm:$0x1]
  %v290 = vpack.c.bf16 %v266, %v265
  %v291 = vpack.c.bf16 %v268, %v267
  %v292 = vpack.c.bf16 %v270, %v269
  %v293 = vpack.c.bf16 %v272, %v271
  %294 = vmatprep.subr.bf16.mxu0 0
  %295 = vmatpush1.bf16.msra.mxu0 %v290
  %296 = vmatprep.subr.bf16.mxu0 0
  %297 = vmatpush1.bf16.msra.mxu0 %v291
  %298 = vmatprep.subr.bf16.mxu0 0
  %299 = vmatpush1.bf16.msra.mxu0 %v292
  %300 = vmatprep.subr.bf16.mxu0 0
  %301 = vmatpush1.bf16.msra.mxu0 %v293
  %302 = vmatprep.subr.bf16.mxu0 0
  %303 = vmatpush1.bf16.msra.mxu0 0
  %304 = vmatprep.subr.bf16.mxu0 0
  %305 = vmatpush1.bf16.msra.mxu0 0
  %306 = vmatprep.subr.bf16.mxu0 0
  %307 = vmatpush1.bf16.msra.mxu0 0
  %308 = vmatprep.subr.bf16.mxu0 0
  %309 = vmatpush1.bf16.msra.mxu0 0
  %310 = vmatprep.subr.bf16.mxu0 0
  %311 = vmatpush1.bf16.msra.mxu0 0
  %312 = vmatprep.subr.bf16.mxu0 0
  %313 = vmatpush1.bf16.msra.mxu0 0
  %314 = vmatprep.subr.bf16.mxu0 0
  %315 = vmatpush1.bf16.msra.mxu0 0
  %316 = vmatprep.subr.bf16.mxu0 0
  %317 = vmatpush1.bf16.msra.mxu0 0
  %318 = vmatprep.subr.bf16.mxu0 0
  %319 = vmatpush1.bf16.msra.mxu0 0
  %320 = vmatprep.subr.bf16.mxu0 0
  %321 = vmatpush1.bf16.msra.mxu0 0
  %322 = vmatprep.subr.bf16.mxu0 0
  %323 = vmatpush1.bf16.msra.mxu0 0
  %324 = vmatprep.subr.bf16.mxu0 0
  %325 = vmatpush1.bf16.msra.mxu0 0
  %326 = vmatprep.mubr.bf16.mxu0 0
  %327 = vmatmul.mubr.bf16.gmra.mrb[0].mxu0 %v95
  %v328 = vpop.f32.mrb[0].mxu0
  %v329 = vadd.f32 0.0, %v328
  %v330 = vpop.f32.mrb[0].mxu0
  %v331 = vpop.f32.mrb[0].mxu0
  %v332 = vadd.f32 0.0, %v331
  %v333 = vpop.f32.mrb[0].mxu0
  %334 = vmatprep.mubr.bf16.mxu0 0
  %335 = vmatmul.mubr.bf16.gmra.mrb[0].mxu0 %v98
  %v336 = vpop.f32.mrb[0].mxu0
  %v337 = vadd.f32 0.0, %v336
  %v338 = vpop.f32.mrb[0].mxu0
  %v339 = vpop.f32.mrb[0].mxu0
  %v340 = vadd.f32 0.0, %v339
  %v341 = vpop.f32.mrb[0].mxu0
  %342 = vmatprep.mubr.bf16.mxu0 0
  %343 = vmatmul.mubr.bf16.gmra.mrb[0].mxu0 %v101
  %v344 = vpop.f32.mrb[0].mxu0
  %v345 = vadd.f32 0.0, %v344
  %v346 = vpop.f32.mrb[0].mxu0
  %v347 = vpop.f32.mrb[0].mxu0
  %v348 = vadd.f32 0.0, %v347
  %v349 = vpop.f32.mrb[0].mxu0
  %350 = vmatprep.mubr.bf16.mxu0 0
  %351 = vmatmul.mubr.bf16.gmra.mrb[0].mxu0 %v104
  %v352 = vpop.f32.mrb[0].mxu0
  %v353 = vadd.f32 0.0, %v352
  %v354 = vpop.f32.mrb[0].mxu0
  %v355 = vpop.f32.mrb[0].mxu0
  %v356 = vadd.f32 0.0, %v355
  %v357 = vpop.f32.mrb[0].mxu0
  %358 = vdwg.mxu0
  %v359 = vpack.c.bf16 %v332, %v329
  %v360 = vpack.c.bf16 %v340, %v337
  %v361 = vpack.c.bf16 %v348, %v345
  %v362 = vpack.c.bf16 %v356, %v353
  %v364 = vlaneseq
  %v365 = vshrl.u32 %v364, 7
  %v366 = vsub.s32 0, %v365
  %v367 = vrot.slane %v289, %v366
  %v385 = vunpack.c.l.b16 %v273
  %v386 = vunpack.c.l.b16 %v274
  %v387 = vunpack.c.l.b16 %v275
  %v388 = vunpack.c.l.b16 %v276
  %v389 = vunpack.c.l.b16 %v277
  %v390 = vunpack.c.l.b16 %v278
  %v391 = vunpack.c.l.b16 %v279
  %v392 = vunpack.c.l.b16 %v280
  %v393 = vunpack.c.l.b16 %v281
  %v394 = vunpack.c.l.b16 %v282
  %v395 = vunpack.c.l.b16 %v283
  %v396 = vunpack.c.l.b16 %v284
  %v397 = vunpack.c.l.b16 %v285
  %v398 = vunpack.c.l.b16 %v286
  %v399 = vunpack.c.l.b16 %v287
  %v400 = vunpack.c.l.b16 %v288
  %v401 = vpack.c.b16 %v386, %v385
  %v402 = vpack.c.b16 %v388, %v387
  %v403 = vpack.c.b16 %v390, %v389
  %v404 = vpack.c.b16 %v392, %v391
  %v405 = vpack.c.b16 %v394, %v393
  %v406 = vpack.c.b16 %v396, %v395
  %v407 = vpack.c.b16 %v398, %v397
  %v408 = vpack.c.b16 %v400, %v399
  %417 = vmatprep.subr.bf16.mxu0 0
  %418 = vmatpush1.bf16.msra.mxu0 %v401
  %419 = vmatprep.subr.bf16.mxu0 0
  %420 = vmatpush1.bf16.msra.mxu0 %v402
  %421 = vmatprep.subr.bf16.mxu0 0
  %422 = vmatpush1.bf16.msra.mxu0 %v403
  %423 = vmatprep.subr.bf16.mxu0 0
  %424 = vmatpush1.bf16.msra.mxu0 %v404
  %425 = vmatprep.subr.bf16.mxu0 0
  %426 = vmatpush1.bf16.msra.mxu0 %v405
  %427 = vmatprep.subr.bf16.mxu0 0
  %428 = vmatpush1.bf16.msra.mxu0 %v406
  %429 = vmatprep.subr.bf16.mxu0 0
  %430 = vmatpush1.bf16.msra.mxu0 %v407
  %431 = vmatprep.subr.bf16.mxu0 0
  %432 = vmatpush1.bf16.msra.mxu0 %v408
  %433 = vmatprep.subr.bf16.mxu0 0
  %434 = vmatpush1.bf16.msra.mxu0 0
  %435 = vmatprep.subr.bf16.mxu0 0
  %436 = vmatpush1.bf16.msra.mxu0 0
  %437 = vmatprep.subr.bf16.mxu0 0
  %438 = vmatpush1.bf16.msra.mxu0 0
  %439 = vmatprep.subr.bf16.mxu0 0
  %440 = vmatpush1.bf16.msra.mxu0 0
  %441 = vmatprep.subr.bf16.mxu0 0
  %442 = vmatpush1.bf16.msra.mxu0 0
  %443 = vmatprep.subr.bf16.mxu0 0
  %444 = vmatpush1.bf16.msra.mxu0 0
  %445 = vmatprep.subr.bf16.mxu0 0
  %446 = vmatpush1.bf16.msra.mxu0 0
  %447 = vmatprep.subr.bf16.mxu0 0
  %448 = vmatpush1.bf16.msra.mxu0 0
  %449 = vmatprep.mubr.bf16.mxu0 0
  %450 = vmatmul.mubr.bf16.gmra.mrb[0].mxu0 %v359
  %v451 = vpop.f32.mrb[0].mxu0
  %v452 = vadd.f32 %v367, %v451
  %v453 = vpop.f32.mrb[0].mxu0
  %v454 = vpop.f32.mrb[0].mxu0
  %v455 = vadd.f32 %v367, %v454
  %v456 = vpop.f32.mrb[0].mxu0
  %457 = vmatprep.mubr.bf16.mxu0 0
  %458 = vmatmul.mubr.bf16.gmra.mrb[0].mxu0 %v360
  %v459 = vpop.f32.mrb[0].mxu0
  %v460 = vadd.f32 %v367, %v459
  %v461 = vpop.f32.mrb[0].mxu0
  %v462 = vpop.f32.mrb[0].mxu0
  %v463 = vadd.f32 %v367, %v462
  %v464 = vpop.f32.mrb[0].mxu0
  %465 = vmatprep.mubr.bf16.mxu0 0
  %466 = vmatmul.mubr.bf16.gmra.mrb[0].mxu0 %v361
  %v467 = vpop.f32.mrb[0].mxu0
  %v468 = vadd.f32 %v367, %v467
  %v469 = vpop.f32.mrb[0].mxu0
  %v470 = vpop.f32.mrb[0].mxu0
  %v471 = vadd.f32 %v367, %v470
  %v472 = vpop.f32.mrb[0].mxu0
  %473 = vmatprep.mubr.bf16.mxu0 0
  %474 = vmatmul.mubr.bf16.gmra.mrb[0].mxu0 %v362
  %v475 = vpop.f32.mrb[0].mxu0
  %v476 = vadd.f32 %v367, %v475
  %v477 = vpop.f32.mrb[0].mxu0
  %v478 = vpop.f32.mrb[0].mxu0
  %v479 = vadd.f32 %v367, %v478
  %v480 = vpop.f32.mrb[0].mxu0
  %481 = vdwg.mxu0
  %v482 = vmax.f32 %v452, 0.0
  %v483 = vmax.f32 %v455, 0.0
  %v484 = vmax.f32 %v460, 0.0
  %v485 = vmax.f32 %v463, 0.0
  %v486 = vmax.f32 %v468, 0.0
  %v487 = vmax.f32 %v471, 0.0
  %v488 = vmax.f32 %v476, 0.0
  %v489 = vmax.f32 %v479, 0.0
  %v490 = vld [vmem:[%s6] sm:$0xf]
  %v491 = vld [vmem:[%s6 + $0x4] sm:$0xf]
  %v492 = vld [vmem:[%s6 + $0x8] sm:$0xf]
  %v493 = vld [vmem:[%s6 + $0xc] sm:$0xf]
  %v494 = vld [vmem:[%s6 + $0x10] sm:$0xf]
  %v495 = vld [vmem:[%s6 + $0x14] sm:$0xf]
  %v496 = vld [vmem:[%s6 + $0x18] sm:$0xf]
  %v497 = vld [vmem:[%s6 + $0x1c] sm:$0xf]
  %v498 = vld [vmem:[%s6 + $0x20] sm:$0xf]
  %v499 = vld [vmem:[%s6 + $0x24] sm:$0xf]
  %v500 = vld [vmem:[%s6 + $0x28] sm:$0xf]
  %v501 = vld [vmem:[%s6 + $0x2c] sm:$0xf]
  %v502 = vld [vmem:[%s6 + $0x30] sm:$0xf]
  %v503 = vld [vmem:[%s6 + $0x34] sm:$0xf]
  %v504 = vld [vmem:[%s6 + $0x38] sm:$0xf]
  %v505 = vld [vmem:[%s6 + $0x3c] sm:$0xf]
  %v506 = vld [vmem:[%s7] sm:$0x1]
  %v507 = vpack.c.bf16 %v483, %v482
  %v508 = vpack.c.bf16 %v485, %v484
  %v509 = vpack.c.bf16 %v487, %v486
  %v510 = vpack.c.bf16 %v489, %v488
  %511 = vmatprep.subr.bf16.mxu0 0
  %512 = vmatpush1.bf16.msra.mxu0 %v507
  %513 = vmatprep.subr.bf16.mxu0 0
  %514 = vmatpush1.bf16.msra.mxu0 %v508
  %515 = vmatprep.subr.bf16.mxu0 0
  %516 = vmatpush1.bf16.msra.mxu0 %v509
  %517 = vmatprep.subr.bf16.mxu0 0
  %518 = vmatpush1.bf16.msra.mxu0 %v510
  %519 = vmatprep.subr.bf16.mxu0 0
  %520 = vmatpush1.bf16.msra.mxu0 0
  %521 = vmatprep.subr.bf16.mxu0 0
  %522 = vmatpush1.bf16.msra.mxu0 0
  %523 = vmatprep.subr.bf16.mxu0 0
  %524 = vmatpush1.bf16.msra.mxu0 0
  %525 = vmatprep.subr.bf16.mxu0 0
  %526 = vmatpush1.bf16.msra.mxu0 0
  %527 = vmatprep.subr.bf16.mxu0 0
  %528 = vmatpush1.bf16.msra.mxu0 0
  %529 = vmatprep.subr.bf16.mxu0 0
  %530 = vmatpush1.bf16.msra.mxu0 0
  %531 = vmatprep.subr.bf16.mxu0 0
  %532 = vmatpush1.bf16.msra.mxu0 0
  %533 = vmatprep.subr.bf16.mxu0 0
  %534 = vmatpush1.bf16.msra.mxu0 0
  %535 = vmatprep.subr.bf16.mxu0 0
  %536 = vmatpush1.bf16.msra.mxu0 0
  %537 = vmatprep.subr.bf16.mxu0 0
  %538 = vmatpush1.bf16.msra.mxu0 0
  %539 = vmatprep.subr.bf16.mxu0 0
  %540 = vmatpush1.bf16.msra.mxu0 0
  %541 = vmatprep.subr.bf16.mxu0 0
  %542 = vmatpush1.bf16.msra.mxu0 0
  %543 = vmatprep.mubr.bf16.mxu0 0
  %544 = vmatmul.mubr.bf16.gmra.mrb[0].mxu0 %v95
  %v545 = vpop.f32.mrb[0].mxu0
  %v546 = vadd.f32 0.0, %v545
  %v547 = vpop.f32.mrb[0].mxu0
  %v548 = vpop.f32.mrb[0].mxu0
  %v549 = vadd.f32 0.0, %v548
  %v550 = vpop.f32.mrb[0].mxu0
  %551 = vmatprep.mubr.bf16.mxu0 0
  %552 = vmatmul.mubr.bf16.gmra.mrb[0].mxu0 %v98
  %v553 = vpop.f32.mrb[0].mxu0
  %v554 = vadd.f32 0.0, %v553
  %v555 = vpop.f32.mrb[0].mxu0
  %v556 = vpop.f32.mrb[0].mxu0
  %v557 = vadd.f32 0.0, %v556
  %v558 = vpop.f32.mrb[0].mxu0
  %559 = vmatprep.mubr.bf16.mxu0 0
  %560 = vmatmul.mubr.bf16.gmra.mrb[0].mxu0 %v101
  %v561 = vpop.f32.mrb[0].mxu0
  %v562 = vadd.f32 0.0, %v561
  %v563 = vpop.f32.mrb[0].mxu0
  %v564 = vpop.f32.mrb[0].mxu0
  %v565 = vadd.f32 0.0, %v564
  %v566 = vpop.f32.mrb[0].mxu0
  %567 = vmatprep.mubr.bf16.mxu0 0
  %568 = vmatmul.mubr.bf16.gmra.mrb[0].mxu0 %v104
  %v569 = vpop.f32.mrb[0].mxu0
  %v570 = vadd.f32 0.0, %v569
  %v571 = vpop.f32.mrb[0].mxu0
  %v572 = vpop.f32.mrb[0].mxu0
  %v573 = vadd.f32 0.0, %v572
  %v574 = vpop.f32.mrb[0].mxu0
  %575 = vdwg.mxu0
  %v576 = vpack.c.bf16 %v549, %v546
  %v577 = vpack.c.bf16 %v557, %v554
  %v578 = vpack.c.bf16 %v565, %v562
  %v579 = vpack.c.bf16 %v573, %v570
  %v581 = vlaneseq
  %v582 = vshrl.u32 %v581, 7
  %v583 = vsub.s32 0, %v582
  %v584 = vrot.slane %v506, %v583
  %v602 = vunpack.c.l.b16 %v490
  %v603 = vunpack.c.l.b16 %v491
  %v604 = vunpack.c.l.b16 %v492
  %v605 = vunpack.c.l.b16 %v493
  %v606 = vunpack.c.l.b16 %v494
  %v607 = vunpack.c.l.b16 %v495
  %v608 = vunpack.c.l.b16 %v496
  %v609 = vunpack.c.l.b16 %v497
  %v610 = vunpack.c.l.b16 %v498
  %v611 = vunpack.c.l.b16 %v499
  %v612 = vunpack.c.l.b16 %v500
  %v613 = vunpack.c.l.b16 %v501
  %v614 = vunpack.c.l.b16 %v502
  %v615 = vunpack.c.l.b16 %v503
  %v616 = vunpack.c.l.b16 %v504
  %v617 = vunpack.c.l.b16 %v505
  %v618 = vpack.c.b16 %v603, %v602
  %v619 = vpack.c.b16 %v605, %v604
  %v620 = vpack.c.b16 %v607, %v606
  %v621 = vpack.c.b16 %v609, %v608
  %v622 = vpack.c.b16 %v611, %v610
  %v623 = vpack.c.b16 %v613, %v612
  %v624 = vpack.c.b16 %v615, %v614
  %v625 = vpack.c.b16 %v617, %v616
  %634 = vmatprep.subr.bf16.mxu0 0
  %635 = vmatpush1.bf16.msra.mxu0 %v618
  %636 = vmatprep.subr.bf16.mxu0 0
  %637 = vmatpush1.bf16.msra.mxu0 %v619
  %638 = vmatprep.subr.bf16.mxu0 0
  %639 = vmatpush1.bf16.msra.mxu0 %v620
  %640 = vmatprep.subr.bf16.mxu0 0
  %641 = vmatpush1.bf16.msra.mxu0 %v621
  %642 = vmatprep.subr.bf16.mxu0 0
  %643 = vmatpush1.bf16.msra.mxu0 %v622
  %644 = vmatprep.subr.bf16.mxu0 0
  %645 = vmatpush1.bf16.msra.mxu0 %v623
  %646 = vmatprep.subr.bf16.mxu0 0
  %647 = vmatpush1.bf16.msra.mxu0 %v624
  %648 = vmatprep.subr.bf16.mxu0 0
  %649 = vmatpush1.bf16.msra.mxu0 %v625
  %650 = vmatprep.subr.bf16.mxu0 0
  %651 = vmatpush1.bf16.msra.mxu0 0
  %652 = vmatprep.subr.bf16.mxu0 0
  %653 = vmatpush1.bf16.msra.mxu0 0
  %654 = vmatprep.subr.bf16.mxu0 0
  %655 = vmatpush1.bf16.msra.mxu0 0
  %656 = vmatprep.subr.bf16.mxu0 0
  %657 = vmatpush1.bf16.msra.mxu0 0
  %658 = vmatprep.subr.bf16.mxu0 0
  %659 = vmatpush1.bf16.msra.mxu0 0
  %660 = vmatprep.subr.bf16.mxu0 0
  %661 = vmatpush1.bf16.msra.mxu0 0
  %662 = vmatprep.subr.bf16.mxu0 0
  %663 = vmatpush1.bf16.msra.mxu0 0
  %664 = vmatprep.subr.bf16.mxu0 0
  %665 = vmatpush1.bf16.msra.mxu0 0
  %666 = vmatprep.mubr.bf16.mxu0 0
  %667 = vmatmul.mubr.bf16.gmra.mrb[0].mxu0 %v576
  %v668 = vpop.f32.mrb[0].mxu0
  %v669 = vadd.f32 %v584, %v668
  %v670 = vpop.f32.mrb[0].mxu0
  %v671 = vpop.f32.mrb[0].mxu0
  %v672 = vadd.f32 %v584, %v671
  %v673 = vpop.f32.mrb[0].mxu0
  %674 = vmatprep.mubr.bf16.mxu0 0
  %675 = vmatmul.mubr.bf16.gmra.mrb[0].mxu0 %v577
  %v676 = vpop.f32.mrb[0].mxu0
  %v677 = vadd.f32 %v584, %v676
  %v678 = vpop.f32.mrb[0].mxu0
  %v679 = vpop.f32.mrb[0].mxu0
  %v680 = vadd.f32 %v584, %v679
  %v681 = vpop.f32.mrb[0].mxu0
  %682 = vmatprep.mubr.bf16.mxu0 0
  %683 = vmatmul.mubr.bf16.gmra.mrb[0].mxu0 %v578
  %v684 = vpop.f32.mrb[0].mxu0
  %v685 = vadd.f32 %v584, %v684
  %v686 = vpop.f32.mrb[0].mxu0
  %v687 = vpop.f32.mrb[0].mxu0
  %v688 = vadd.f32 %v584, %v687
  %v689 = vpop.f32.mrb[0].mxu0
  %690 = vmatprep.mubr.bf16.mxu0 0
  %691 = vmatmul.mubr.bf16.gmra.mrb[0].mxu0 %v579
  %v692 = vpop.f32.mrb[0].mxu0
  %v693 = vadd.f32 %v584, %v692
  %v694 = vpop.f32.mrb[0].mxu0
  %v695 = vpop.f32.mrb[0].mxu0
  %v696 = vadd.f32 %v584, %v695
  %v697 = vpop.f32.mrb[0].mxu0
  %698 = vdwg.mxu0
  %v699 = vlaneseq
  %v700 = vand.u32 %v699, 127
  %vm701 = vcmp.lt.s32.totalorder %v700, 8
  %v702 = vsel %vm701, %v669, -1e+30
  %v703 = vsel %vm701, %v672, -1e+30
  %v704 = vsel %vm701, %v677, -1e+30
  %v705 = vsel %vm701, %v680, -1e+30
  %v706 = vsel %vm701, %v685, -1e+30
  %v707 = vsel %vm701, %v688, -1e+30
  %v708 = vsel %vm701, %v693, -1e+30
  %v709 = vsel %vm701, %v696, -1e+30
  %710 = vmax.xlane.f32.xlu0 %v702
  %v711 = vpop.xlane.xlu0 %710
  %712 = vmax.xlane.f32.xlu0 %v703
  %v713 = vpop.xlane.xlu0 %712
  %714 = vmax.xlane.f32.xlu0 %v704
  %v715 = vpop.xlane.xlu0 %714
  %716 = vmax.xlane.f32.xlu0 %v705
  %v717 = vpop.xlane.xlu0 %716
  %718 = vmax.xlane.f32.xlu0 %v706
  %v719 = vpop.xlane.xlu0 %718
  %720 = vmax.xlane.f32.xlu0 %v707
  %v721 = vpop.xlane.xlu0 %720
  %722 = vmax.xlane.f32.xlu0 %v708
  %v723 = vpop.xlane.xlu0 %722
  %724 = vmax.xlane.f32.xlu0 %v709
  %v725 = vpop.xlane.xlu0 %724
  %v726 = vsub.f32 %v702, %v711
  %v727 = vsub.f32 %v703, %v713
  %v728 = vsub.f32 %v704, %v715
  %v729 = vsub.f32 %v705, %v717
  %v730 = vsub.f32 %v706, %v719
  %v731 = vsub.f32 %v707, %v721
  %v732 = vsub.f32 %v708, %v723
  %v733 = vsub.f32 %v709, %v725
  %v734 = vmul.f32 %v726, 1.442695
  %v735 = vpow.pop %v734
  %v736 = vmul.f32 %v727, 1.442695
  %v737 = vpow.pop %v736
  %v738 = vmul.f32 %v728, 1.442695
  %v739 = vpow.pop %v738
  %v740 = vmul.f32 %v729, 1.442695
  %v741 = vpow.pop %v740
  %v742 = vmul.f32 %v730, 1.442695
  %v743 = vpow.pop %v742
  %v744 = vmul.f32 %v731, 1.442695
  %v745 = vpow.pop %v744
  %v746 = vmul.f32 %v732, 1.442695
  %v747 = vpow.pop %v746
  %v748 = vmul.f32 %v733, 1.442695
  %v749 = vpow.pop %v748
  %v750 = vsel %vm701, %v735, 0.0
  %v751 = vsel %vm701, %v737, 0.0
  %v752 = vsel %vm701, %v739, 0.0
  %v753 = vsel %vm701, %v741, 0.0
  %v754 = vsel %vm701, %v743, 0.0
  %v755 = vsel %vm701, %v745, 0.0
  %v756 = vsel %vm701, %v747, 0.0
  %v757 = vsel %vm701, %v749, 0.0
  %758 = vadd.xlane.f32.xlu0 %v750
  %v759 = vpop.xlane.xlu0 %758
  %760 = vadd.xlane.f32.xlu0 %v751
  %v761 = vpop.xlane.xlu0 %760
  %762 = vadd.xlane.f32.xlu0 %v752
  %v763 = vpop.xlane.xlu0 %762
  %764 = vadd.xlane.f32.xlu0 %v753
  %v765 = vpop.xlane.xlu0 %764
  %766 = vadd.xlane.f32.xlu0 %v754
  %v767 = vpop.xlane.xlu0 %766
  %768 = vadd.xlane.f32.xlu0 %v755
  %v769 = vpop.xlane.xlu0 %768
  %770 = vadd.xlane.f32.xlu0 %v756
  %v771 = vpop.xlane.xlu0 %770
  %772 = vadd.xlane.f32.xlu0 %v757
  %v773 = vpop.xlane.xlu0 %772
  %v774 = vlog2.pop %v759
  %v775 = vmul.f32 %v774, 0.6931472
  %v776 = vlog2.pop %v761
  %v777 = vmul.f32 %v776, 0.6931472
  %v778 = vlog2.pop %v763
  %v779 = vmul.f32 %v778, 0.6931472
  %v780 = vlog2.pop %v765
  %v781 = vmul.f32 %v780, 0.6931472
  %v782 = vlog2.pop %v767
  %v783 = vmul.f32 %v782, 0.6931472
  %v784 = vlog2.pop %v769
  %v785 = vmul.f32 %v784, 0.6931472
  %v786 = vlog2.pop %v771
  %v787 = vmul.f32 %v786, 0.6931472
  %v788 = vlog2.pop %v773
  %v789 = vmul.f32 %v788, 0.6931472
  %v790 = vsub.f32 %v726, %v775
  %v791 = vsub.f32 %v727, %v777
  %v792 = vsub.f32 %v728, %v779
  %v793 = vsub.f32 %v729, %v781
  %v794 = vsub.f32 %v730, %v783
  %v795 = vsub.f32 %v731, %v785
  %v796 = vsub.f32 %v732, %v787
  %v797 = vsub.f32 %v733, %v789
  %798 = vst [vmem:[%s8] sm:$0xff] %v790
  %799 = vst [vmem:[%s8 + $0x8] sm:$0xff] %v791
  %800 = vst [vmem:[%s8 + $0x10] sm:$0xff] %v792
  %801 = vst [vmem:[%s8 + $0x18] sm:$0xff] %v793
  %802 = vst [vmem:[%s8 + $0x20] sm:$0xff] %v794
  %803 = vst [vmem:[%s8 + $0x28] sm:$0xff] %v795
  %804 = vst [vmem:[%s8 + $0x30] sm:$0xff] %v796
  %805 = vst [vmem:[%s8 + $0x38] sm:$0xff] %v797
  // Predicated region
  $region34: #{gcn_forward.1} parent=0 // pred_check
    _
  $region35: #{gcn_forward.1} parent=0 // pred_check_branch
    %807 = sbr.rel (0) target = $region37
  $region36: #{gcn_forward.1} parent=0 // pred_region
    _
  $region37: #{gcn_forward.1} parent=0 // pred_fallthru
    _
  // Predicated region
  $region38: #{gcn_forward.1} parent=0 // pred_check
    _
  $region39: #{gcn_forward.1} parent=0 // pred_check_branch
    %809 = sbr.rel (0) target = $region41
  $region40: #{gcn_forward.1} parent=0 // pred_region
    _
  $region41: #{gcn_forward.1} parent=0 // pred_fallthru
    _

</llo_original>
